<compile_context>
chip_gen: v7x
topology: tpu7x:2x2x1
jax: 0.10.0
libtpu: 0.0.40
codegen_flags: <defaults>
</compile_context>

<pallas_src>
import functools
import math

import jax
import jax.numpy as jnp
from jax.experimental import pallas as pl
from jax.experimental.pallas import tpu as pltpu

LANE = 128
SUBLANE = 8


def _round_up(n, m):
    return ((n + m - 1) // m) * m


def _vae_kernel(x_ref, noise_ref, p_ref, out_ref, mu_ref, lv_ref, *, dims, offs):
    D, H, C, reps = dims["D"], dims["H"], dims["C"], dims["reps"]
    H2 = 2 * H

    # Static slices into the packed parameter slab (zero-cost views -> loads).
    enc_w1 = p_ref[offs["enc_w1"]:offs["enc_w1"] + D, :H2]     # (D, 2H)
    pos_b1 = p_ref[offs["pos_b1"]:offs["pos_b1"] + C, :H2]     # (C, 2H)  bias w/ pos folded in
    enc_w2 = p_ref[offs["enc_w2"]:offs["enc_w2"] + H2, :H2]    # (2H, 2H) block-diagonal
    enc_b2 = p_ref[offs["enc_b2"]:offs["enc_b2"] + 1, :H2]     # (1, 2H)
    de_w1 = p_ref[offs["de_w1"]:offs["de_w1"] + H, :H]         # (H, H)
    de_b1 = p_ref[offs["de_b1"]:offs["de_b1"] + 1, :H]         # (1, H)
    de_w2 = p_ref[offs["de_w2"]:offs["de_w2"] + H, :D]         # (H, D)
    de_b2 = p_ref[offs["de_b2"]:offs["de_b2"] + 1, :D]         # (1, D)

    x = x_ref[...]                                             # (tm, D)

    # Encoder layer 1: mu & logvar fused into one (D, 2H) matmul; pos-embed is
    # pre-folded into the per-channel bias pos_b1 (period C along rows).
    h = jnp.dot(x, enc_w1, preferred_element_type=jnp.float32)
    h = h + jnp.tile(pos_b1, (reps, 1))                        # (tm, 2H)
    h = jnp.maximum(h, 0.0)

    # Encoder layer 2: block-diagonal fused weight -> [mu | logvar].
    ml = jnp.dot(h, enc_w2, preferred_element_type=jnp.float32) + enc_b2
    mu = ml[:, :H]
    logvar = ml[:, H:]

    # Reparameterization: torch.e ** logvar == exp(logvar) (intentional, matches module).
    latents = mu + noise_ref[...] * jnp.exp(logvar)

    # Decoder: Linear -> ReLU -> Linear.
    hd = jnp.dot(latents, de_w1, preferred_element_type=jnp.float32) + de_b1
    hd = jnp.maximum(hd, 0.0)
    dec = jnp.dot(hd, de_w2, preferred_element_type=jnp.float32) + de_b2

    out_ref[...] = dec.astype(out_ref.dtype)
    mu_ref[...] = mu.astype(mu_ref.dtype)
    lv_ref[...] = logvar.astype(lv_ref.dtype)


def prepare_params(raw):
    """Fold pos-embed into the first-layer bias, fuse the mu/logvar encoders and
    pack every weight/bias into ONE lane-aligned f32 slab (single param DMA)."""
    D, H = raw["mu_w1"].shape
    C = raw["pos"].shape[0]

    enc_w1 = jnp.concatenate([raw["mu_w1"], raw["lv_w1"]], axis=1)      # (D, 2H)
    enc_b1 = jnp.concatenate([raw["mu_b1"], raw["lv_b1"]], axis=1)      # (1, 2H)
    # (x + pos) @ W1 + b1 == x @ W1 + (pos @ W1 + b1): fold pos into the bias.
    pos_b1 = raw["pos"] @ enc_w1 + enc_b1                               # (C, 2H)
    z = jnp.zeros((H, H), jnp.float32)
    enc_w2 = jnp.block([[raw["mu_w2"], z], [z, raw["lv_w2"]]])          # (2H, 2H)
    enc_b2 = jnp.concatenate([raw["mu_b2"], raw["lv_b2"]], axis=1)      # (1, 2H)

    pieces = {
        "enc_w1": enc_w1,
        "pos_b1": pos_b1,
        "enc_w2": enc_w2,
        "enc_b2": enc_b2,
        "de_w1": raw["de_w1"],
        "de_b1": raw["de_b1"],
        "de_w2": raw["de_w2"],
        "de_b2": raw["de_b2"],
    }

    width = _round_up(max(p.shape[1] for p in pieces.values()), LANE)
    offs, rows = {}, 0
    for name, p in pieces.items():
        offs[name] = rows
        rows += _round_up(p.shape[0], SUBLANE)

    slab = jnp.zeros((rows, width), jnp.float32)
    for name, p in pieces.items():
        slab = slab.at[offs[name]:offs[name] + p.shape[0], :p.shape[1]].set(p)

    meta = {"D": D, "H": H, "C": C, "offs": offs}
    return slab, meta


def vae_forward(x, slab, meta, noise):
    """x: (B, C, D) f32, noise: (B, C, H) f32 -> (out (B,C,D), mu (B,C,H), logvar (B,C,H))."""
    B, C, D = x.shape
    H = noise.shape[-1]
    assert C == meta["C"] and D == meta["D"] and H == meta["H"]
    M = B * C

    # Fold batch into the matmul M dimension (free reshapes, no pads).
    x2 = x.reshape(M, D)
    noise2 = noise.reshape(M, H)

    # Tile M only when it is big enough to matter: a parallel grid engages both
    # TensorCores on v7x and keeps VMEM bounded as B*C grows; tiny M keeps the
    # zero-grid single-block fast path.  TILE_M is a multiple of 8 and of C so
    # the per-channel pos bias phase is identical in every tile.
    tile_base = math.lcm(C, SUBLANE)
    tile_m = tile_base * max(1, 256 // tile_base)
    use_grid = (M > tile_m) and (M % tile_m == 0)

    kernel = functools.partial(
        _vae_kernel,
        dims={"D": D, "H": H, "C": C, "reps": (tile_m if use_grid else M) // C},
        offs=meta["offs"],
    )
    out_shapes = (
        jax.ShapeDtypeStruct((M, D), jnp.float32),
        jax.ShapeDtypeStruct((M, H), jnp.float32),
        jax.ShapeDtypeStruct((M, H), jnp.float32),
    )

    if use_grid:
        pr, pw = slab.shape
        grid_spec = pltpu.PrefetchScalarGridSpec(
            num_scalar_prefetch=0,
            grid=(M // tile_m,),
            in_specs=[
                pl.BlockSpec((tile_m, D), lambda i: (i, 0)),
                pl.BlockSpec((tile_m, H), lambda i: (i, 0)),
                pl.BlockSpec((pr, pw), lambda i: (0, 0)),     # params resident across steps
            ],
            out_specs=(
                pl.BlockSpec((tile_m, D), lambda i: (i, 0)),
                pl.BlockSpec((tile_m, H), lambda i: (i, 0)),
                pl.BlockSpec((tile_m, H), lambda i: (i, 0)),
            ),
        )
        out, mu, logvar = pl.pallas_call(
            kernel,
            out_shape=out_shapes,
            grid_spec=grid_spec,
            compiler_params=pltpu.CompilerParams(
                dimension_semantics=("parallel",)),
        )(x2, noise2, slab)
    else:
        vmem = pl.BlockSpec(memory_space=pltpu.MemorySpace.VMEM)
        out, mu, logvar = pl.pallas_call(
            kernel,
            out_shape=out_shapes,
            in_specs=[vmem, vmem, vmem],
            out_specs=(vmem, vmem, vmem),
        )(x2, noise2, slab)

    return out.reshape(B, C, D), mu.reshape(B, C, H), logvar.reshape(B, C, H)


def init_params(key, in_dim, in_channels, hidden_dim):
    """Deterministic synthetic params. Linear weights stored as (in, out)."""
    ks = jax.random.split(key, 16)
    s = 0.05

    def w(k, shape):
        return jax.random.normal(k, shape, dtype=jnp.float32) * s

    return {
        "pos":   w(ks[0], (in_channels, in_dim)),
        "mu_w1": w(ks[1], (in_dim, hidden_dim)),
        "mu_b1": w(ks[2], (1, hidden_dim)),
        "mu_w2": w(ks[3], (hidden_dim, hidden_dim)),
        "mu_b2": w(ks[4], (1, hidden_dim)),
        "lv_w1": w(ks[5], (in_dim, hidden_dim)),
        "lv_b1": w(ks[6], (1, hidden_dim)),
        "lv_w2": w(ks[7], (hidden_dim, hidden_dim)),
        "lv_b2": w(ks[8], (1, hidden_dim)),
        "de_w1": w(ks[9], (hidden_dim, hidden_dim)),
        "de_b1": w(ks[10], (1, hidden_dim)),
        "de_w2": w(ks[11], (hidden_dim, in_dim)),
        "de_b2": w(ks[12], (1, in_dim)),
    }


def _reference(x, raw, noise):
    """Pure-JAX reference of the PyTorch forward (on the raw, un-fused params)."""
    x_ = x + raw["pos"][None]
    h = jnp.maximum(x_ @ raw["mu_w1"] + raw["mu_b1"], 0.0)
    mu = h @ raw["mu_w2"] + raw["mu_b2"]
    h = jnp.maximum(x_ @ raw["lv_w1"] + raw["lv_b1"], 0.0)
    logvar = h @ raw["lv_w2"] + raw["lv_b2"]
    latents = mu + noise * jnp.exp(logvar)
    h = jnp.maximum(latents @ raw["de_w1"] + raw["de_b1"], 0.0)
    out = h @ raw["de_w2"] + raw["de_b2"]
    return out, mu, logvar


if __name__ == "__main__":
    def run_case(B, C, D, H, key):
        k_par, k_x, k_noise = jax.random.split(key, 3)
        raw = init_params(k_par, in_dim=D, in_channels=C, hidden_dim=H)
        slab, meta = prepare_params(raw)

        x = jax.random.normal(k_x, (B, C, D), dtype=jnp.float32)
        noise = jax.random.normal(k_noise, (B, C, H), dtype=jnp.float32)

        out, mu, logvar = vae_forward(x, slab, meta, noise)
        jax.block_until_ready((out, mu, logvar))

        ref_out, ref_mu, ref_lv = _reference(x, raw, noise)
        assert out.shape == (B, C, D) and mu.shape == (B, C, H) and logvar.shape == (B, C, H)
        assert jnp.allclose(out, ref_out, atol=2e-5, rtol=1e-5)
        assert jnp.allclose(mu, ref_mu, atol=2e-5, rtol=1e-5)
        assert jnp.allclose(logvar, ref_lv, atol=2e-5, rtol=1e-5)

    key = jax.random.PRNGKey(0)
    k1, k2 = jax.random.split(key)
    # Module-consistent small shapes: in_dim D=16, in_channels C=8, hidden H=32.
    run_case(B=2, C=8, D=16, H=32, key=k1)    # single-block fast path
    run_case(B=64, C=8, D=16, H=32, key=k2)   # gridded parallel-M path (TILE_M=256)

    print("KERNEL_OK")
</pallas_src>

<mosaic_0001>
module attributes {stable_mosaic.version = 11 : i64} {
  func.func @_vae_kernel(%arg0: memref<16x16xf32, #tpu.memory_space<vmem>>, %arg1: memref<16x32xf32, #tpu.memory_space<vmem>>, %arg2: memref<176x128xf32, #tpu.memory_space<vmem>>, %arg3: memref<16x16xf32, #tpu.memory_space<vmem>>, %arg4: memref<16x32xf32, #tpu.memory_space<vmem>>, %arg5: memref<16x32xf32, #tpu.memory_space<vmem>>) attributes {dimension_semantics = [], scalar_prefetch = 0 : i64, scratch_operands = 0 : i64, tpu.core_type = #tpu.core_type<tc>} {
    %c0 = arith.constant 0 : index
    %c0_0 = arith.constant 0 : index
    %0 = vector.load %arg2[%c0, %c0_0] : memref<176x128xf32, #tpu.memory_space<vmem>>, vector<16x64xf32>
    %c16 = arith.constant 16 : index
    %c0_1 = arith.constant 0 : index
    %1 = vector.load %arg2[%c16, %c0_1] : memref<176x128xf32, #tpu.memory_space<vmem>>, vector<8x64xf32>
    %c24 = arith.constant 24 : index
    %c0_2 = arith.constant 0 : index
    %2 = vector.load %arg2[%c24, %c0_2] : memref<176x128xf32, #tpu.memory_space<vmem>>, vector<64x64xf32>
    %c88 = arith.constant 88 : index
    %c0_3 = arith.constant 0 : index
    %3 = vector.load %arg2[%c88, %c0_3] : memref<176x128xf32, #tpu.memory_space<vmem>>, vector<1x64xf32>
    %c96 = arith.constant 96 : index
    %c0_4 = arith.constant 0 : index
    %4 = vector.load %arg2[%c96, %c0_4] : memref<176x128xf32, #tpu.memory_space<vmem>>, vector<32x32xf32>
    %c128 = arith.constant 128 : index
    %c0_5 = arith.constant 0 : index
    %5 = vector.load %arg2[%c128, %c0_5] : memref<176x128xf32, #tpu.memory_space<vmem>>, vector<1x32xf32>
    %c136 = arith.constant 136 : index
    %c0_6 = arith.constant 0 : index
    %6 = vector.load %arg2[%c136, %c0_6] : memref<176x128xf32, #tpu.memory_space<vmem>>, vector<32x16xf32>
    %c168 = arith.constant 168 : index
    %c0_7 = arith.constant 0 : index
    %7 = vector.load %arg2[%c168, %c0_7] : memref<176x128xf32, #tpu.memory_space<vmem>>, vector<1x16xf32>
    %c0_8 = arith.constant 0 : index
    %c0_9 = arith.constant 0 : index
    %8 = vector.load %arg0[%c0_8, %c0_9] : memref<16x16xf32, #tpu.memory_space<vmem>>, vector<16x16xf32>
    %cst = arith.constant dense<0.000000e+00> : vector<16x64xf32>
    %9 = tpu.matmul %8, %0, %cst {dimension_numbers = #tpu.dot_dimension_numbers<[1], [0], [0], [1], [0, 0, 1, 1], [], []>} : vector<16x16xf32>, vector<16x64xf32>, vector<16x64xf32> -> vector<16x64xf32>
    %10 = tpu.concatenate %1, %1 in 0 : vector<8x64xf32>, vector<8x64xf32> -> vector<16x64xf32>
    %11 = arith.addf %9, %10 : vector<16x64xf32>
    %cst_10 = arith.constant 0.000000e+00 : f32
    %12 = vector.broadcast %cst_10 : f32 to vector<16x64xf32>
    %13 = arith.maximumf %11, %12 : vector<16x64xf32>
    %cst_11 = arith.constant dense<0.000000e+00> : vector<16x64xf32>
    %14 = tpu.matmul %13, %2, %cst_11 {dimension_numbers = #tpu.dot_dimension_numbers<[1], [0], [0], [1], [0, 0, 1, 1], [], []>} : vector<16x64xf32>, vector<64x64xf32>, vector<16x64xf32> -> vector<16x64xf32>
    %15 = vector.broadcast %3 : vector<1x64xf32> to vector<16x64xf32>
    %16 = arith.addf %14, %15 : vector<16x64xf32>
    %17 = vector.extract_strided_slice %16 {offsets = [0, 0], sizes = [16, 32], strides = [1, 1]} : vector<16x64xf32> to vector<16x32xf32>
    %18 = vector.extract_strided_slice %16 {offsets = [0, 32], sizes = [16, 32], strides = [1, 1]} : vector<16x64xf32> to vector<16x32xf32>
    %c0_12 = arith.constant 0 : index
    %c0_13 = arith.constant 0 : index
    %19 = vector.load %arg1[%c0_12, %c0_13] : memref<16x32xf32, #tpu.memory_space<vmem>>, vector<16x32xf32>
    %20 = math.exp %18 : vector<16x32xf32>
    %21 = arith.mulf %19, %20 : vector<16x32xf32>
    %22 = arith.addf %17, %21 : vector<16x32xf32>
    %cst_14 = arith.constant dense<0.000000e+00> : vector<16x32xf32>
    %23 = tpu.matmul %22, %4, %cst_14 {dimension_numbers = #tpu.dot_dimension_numbers<[1], [0], [0], [1], [0, 0, 1, 1], [], []>} : vector<16x32xf32>, vector<32x32xf32>, vector<16x32xf32> -> vector<16x32xf32>
    %24 = vector.broadcast %5 : vector<1x32xf32> to vector<16x32xf32>
    %25 = arith.addf %23, %24 : vector<16x32xf32>
    %cst_15 = arith.constant 0.000000e+00 : f32
    %26 = vector.broadcast %cst_15 : f32 to vector<16x32xf32>
    %27 = arith.maximumf %25, %26 : vector<16x32xf32>
    %cst_16 = arith.constant dense<0.000000e+00> : vector<16x16xf32>
    %28 = tpu.matmul %27, %6, %cst_16 {dimension_numbers = #tpu.dot_dimension_numbers<[1], [0], [0], [1], [0, 0, 1, 1], [], []>} : vector<16x32xf32>, vector<32x16xf32>, vector<16x16xf32> -> vector<16x16xf32>
    %29 = vector.broadcast %7 : vector<1x16xf32> to vector<16x16xf32>
    %30 = arith.addf %28, %29 : vector<16x16xf32>
    %c0_17 = arith.constant 0 : index
    %c0_18 = arith.constant 0 : index
    %31 = vector.load %arg3[%c0_17, %c0_18] : memref<16x16xf32, #tpu.memory_space<vmem>>, vector<16x16xf32>
    tpu.vector_store %arg3[%c0_17, %c0_18], %30 {strides = array<i32>} : memref<16x16xf32, #tpu.memory_space<vmem>>, vector<16x16xf32>,
    %c0_19 = arith.constant 0 : index
    %c0_20 = arith.constant 0 : index
    %32 = vector.load %arg4[%c0_19, %c0_20] : memref<16x32xf32, #tpu.memory_space<vmem>>, vector<16x32xf32>
    tpu.vector_store %arg4[%c0_19, %c0_20], %17 {strides = array<i32>} : memref<16x32xf32, #tpu.memory_space<vmem>>, vector<16x32xf32>,
    %c0_21 = arith.constant 0 : index
    %c0_22 = arith.constant 0 : index
    %33 = vector.load %arg5[%c0_21, %c0_22] : memref<16x32xf32, #tpu.memory_space<vmem>>, vector<16x32xf32>
    tpu.vector_store %arg5[%c0_21, %c0_22], %18 {strides = array<i32>} : memref<16x32xf32, #tpu.memory_space<vmem>>, vector<16x32xf32>,
    return
  }
}

</mosaic_0001>

<llo_original>
// kernel: tpu_custom_call.1
$region0: #{tpu_custom_call.1}
  #allocation0 [shape = 'u32[]', space=smem, size = 0x4, offset = 0x4, fixed_abs, tag = 'smem constant byte address 0x4 - core index']
  #allocation1 [shape = 'u32[144,128]{1,0:T(1,128)}', space=vmem, size = 0x12000, scoped, tag = 'internal scratch']
  %s0 = inlined_call_operand.hbm [shape: f32[16,16], index: 0, kind: input, shape index: {}]
  %s1 = inlined_call_operand.hbm [shape: f32[16,32], index: 1, kind: input, shape index: {}]
  %s2 = inlined_call_operand.hbm [shape: f32[176,128], index: 2, kind: input, shape index: {}]
  %s3 = inlined_call_operand.hbm [shape: f32[16,16], index: 3, kind: output, shape index: {0}]
  %s4 = inlined_call_operand.hbm [shape: f32[16,32], index: 4, kind: output, shape index: {1}]
  %s5 = inlined_call_operand.hbm [shape: f32[16,32], index: 5, kind: output, shape index: {2}]
  %6 = xla_tuple %s3, %s4, %s5
  %s7 = sld [smem:[#allocation0]]
  $region50: #{tpu_custom_call.1} parent=0
    _
  %s9 = ssub.s32 1, %s7
  %s10 = scalar_select 0, %s9, %s7
  $region1: #{tpu_custom_call.1} parent=0
    #allocation2 [shape = 'u8[8192]{0}', space=vmem, size = 0x2000, scoped, tag = 'input window, operand 0, single buffered']
    #allocation3 [shape = 's32[1]{0}', space=sflag, size = 0x4, scoped, tag = 'scoped memory for tpu_custom_call.1']
    #allocation4 [shape = 's32[1]{0}', space=sflag, size = 0x4, scoped, tag = 'scoped memory for tpu_custom_call.1']
    #allocation5 [shape = 'u8[8192]{0}', space=vmem, size = 0x2000, scoped, tag = 'input window, operand 1, single buffered']
    #allocation6 [shape = 's32[1]{0}', space=sflag, size = 0x4, scoped, tag = 'scoped memory for tpu_custom_call.1']
    #allocation7 [shape = 'u8[90112]{0}', space=vmem, size = 0x16000, scoped, tag = 'input window, operand 2, single buffered']
    #allocation8 [shape = 'u8[8192]{0}', space=vmem, size = 0x2000, scoped, tag = 'output window, operand 0, single buffered']
    #allocation9 [shape = 'u8[8192]{0}', space=vmem, size = 0x2000, scoped, tag = 'output window, operand 1, single buffered']
    #allocation10 [shape = 's32[1]{0}', space=sflag, size = 0x4, scoped, tag = 'scoped memory for tpu_custom_call.1']
    #allocation11 [shape = 'u8[8192]{0}', space=vmem, size = 0x2000, scoped, tag = 'output window, operand 2, single buffered']
    %11 = vsyncpa [#allocation3], 0
    %12 = vsyncpa [#allocation6], 0
    %13 = vsyncpa [#allocation4], 0
    %14 = vsyncpa [#allocation10], 0
    // Predicated region
    $region2: #{tpu_custom_call.1} parent=1 // pred_check
      _
    $region3: #{tpu_custom_call.1} parent=1 // pred_check_branch
      %16 = sbr.rel (0) target = $region5
    $region4: #{tpu_custom_call.1} parent=1 // pred_region
      %s18 = ssub.s32 256, 256
      %19 = vsyncadd [#allocation3], %s18
      %s20 = sshll.u32 [#allocation2], 4
      %s21 = int_to_ptr.vmem [resolvable:$true] %s20
      %26 = dma.hbm_to_vmem [thread:$0]  %s0, 256, %s21, [#allocation3], 128, 128, 8
    $region5: #{tpu_custom_call.1} parent=1 // pred_fallthru
      _
    // Predicated region
    $region6: #{tpu_custom_call.1} parent=1 // pred_check
      _
    $region7: #{tpu_custom_call.1} parent=1 // pred_check_branch
      %28 = sbr.rel (0) target = $region9
    $region8: #{tpu_custom_call.1} parent=1 // pred_region
      %s30 = ssub.s32 256, 256
      %31 = vsyncadd [#allocation6], %s30
      %s32 = sshll.u32 [#allocation5], 4
      %s33 = int_to_ptr.vmem [resolvable:$true] %s32
      %38 = dma.hbm_to_vmem [thread:$0]  %s1, 256, %s33, [#allocation6], 128, 128, 8
    $region9: #{tpu_custom_call.1} parent=1 // pred_fallthru
      _
    // Predicated region
    $region10: #{tpu_custom_call.1} parent=1 // pred_check
      _
    $region11: #{tpu_custom_call.1} parent=1 // pred_check_branch
      %40 = sbr.rel (0) target = $region13
    $region12: #{tpu_custom_call.1} parent=1 // pred_region
      %s42 = ssub.s32 2816, 2816
      %43 = vsyncadd [#allocation6], %s42
      %s44 = sshll.u32 [#allocation7], 4
      %s45 = int_to_ptr.vmem [resolvable:$true] %s44
      %50 = dma.hbm_to_vmem [thread:$0]  %s2, 2816, %s45, [#allocation6], 128, 128, 8
    $region13: #{tpu_custom_call.1} parent=1 // pred_fallthru
      _
    // Predicated region
    $region14: #{tpu_custom_call.1} parent=1 // pred_check
      _
    $region15: #{tpu_custom_call.1} parent=1 // pred_check_branch
      %52 = sbr.rel (0) target = $region17
    $region16: #{tpu_custom_call.1} parent=1 // pred_region
      %53 = dma.done [#allocation3], 256
    $region17: #{tpu_custom_call.1} parent=1 // pred_fallthru
      _
    // Predicated region
    $region18: #{tpu_custom_call.1} parent=1 // pred_check
      _
    $region19: #{tpu_custom_call.1} parent=1 // pred_check_branch
      %55 = sbr.rel (0) target = $region21
    $region20: #{tpu_custom_call.1} parent=1 // pred_region
      %56 = dma.done [#allocation6], 256
    $region21: #{tpu_custom_call.1} parent=1 // pred_fallthru
      _
    // Predicated region
    $region22: #{tpu_custom_call.1} parent=1 // pred_check
      _
    $region23: #{tpu_custom_call.1} parent=1 // pred_check_branch
      %58 = sbr.rel (0) target = $region25
    $region24: #{tpu_custom_call.1} parent=1 // pred_region
      %59 = dma.done [#allocation6], 2816
    $region25: #{tpu_custom_call.1} parent=1 // pred_fallthru
      _
    %v60 = vld [vmem:[#allocation7] sm:$0xff]
    %v61 = vld [vmem:[#allocation7 + $0x8] sm:$0xff]
    %v62 = vld [vmem:[#allocation7 + $0x10] sm:$0xff]
    %v63 = vld [vmem:[#allocation7 + $0x18] sm:$0xff]
    %v64 = vld [vmem:[#allocation7 + $0x20] sm:$0xff]
    %v65 = vld [vmem:[#allocation7 + $0x28] sm:$0xff]
    %v66 = vld [vmem:[#allocation7 + $0x30] sm:$0xff]
    %v67 = vld [vmem:[#allocation7 + $0x38] sm:$0xff]
    %v68 = vld [vmem:[#allocation7 + $0x40] sm:$0xff]
    %v69 = vld [vmem:[#allocation7 + $0x48] sm:$0xff]
    %v70 = vld [vmem:[#allocation7 + $0x50] sm:$0xff]
    %v71 = vld [vmem:[#allocation7 + $0x58] sm:$0x1]
    %v72 = vld [vmem:[#allocation7 + $0x60] sm:$0xff]
    %v73 = vld [vmem:[#allocation7 + $0x68] sm:$0xff]
    %v74 = vld [vmem:[#allocation7 + $0x70] sm:$0xff]
    %v75 = vld [vmem:[#allocation7 + $0x78] sm:$0xff]
    %v76 = vld [vmem:[#allocation7 + $0x80] sm:$0x1]
    %v77 = vld [vmem:[#allocation7 + $0x88] sm:$0xff]
    %v78 = vld [vmem:[#allocation7 + $0x90] sm:$0xff]
    %v79 = vld [vmem:[#allocation7 + $0x98] sm:$0xff]
    %v80 = vld [vmem:[#allocation7 + $0xa0] sm:$0xff]
    %v81 = vld [vmem:[#allocation7 + $0xa8] sm:$0x1]
    %v82 = vld [vmem:[#allocation2] sm:$0xff]
    %v83 = vld [vmem:[#allocation2 + $0x8] sm:$0xff]
    %vm84 = vcmask 130048
    %v86 = vsel %vm84, %v82, 0
    %v89 = vsel %vm84, %v83, 0
    %91 = vmatprep.subr.mxu0 0.0
    %92 = vmatpush1.msra.mxu0 %v60
    %93 = vmatprep.subr.mxu0 0.0
    %94 = vmatpush1.msra.mxu0 %v61
    %95 = vmatprep.subr.mxu0 0.0
    %96 = vmatpush1.msra.mxu0 0.0
    %97 = vmatprep.subr.mxu0 0.0
    %98 = vmatpush1.msra.mxu0 0.0
    %99 = vmatprep.subr.mxu0 0.0
    %100 = vmatpush1.msra.mxu0 0.0
    %101 = vmatprep.subr.mxu0 0.0
    %102 = vmatpush1.msra.mxu0 0.0
    %103 = vmatprep.subr.mxu0 0.0
    %104 = vmatpush1.msra.mxu0 0.0
    %105 = vmatprep.subr.mxu0 0.0
    %106 = vmatpush1.msra.mxu0 0.0
    %107 = vmatprep.subr.mxu0 0.0
    %108 = vmatpush1.msra.mxu0 0.0
    %109 = vmatprep.subr.mxu0 0.0
    %110 = vmatpush1.msra.mxu0 0.0
    %111 = vmatprep.subr.mxu0 0.0
    %112 = vmatpush1.msra.mxu0 0.0
    %113 = vmatprep.subr.mxu0 0.0
    %114 = vmatpush1.msra.mxu0 0.0
    %115 = vmatprep.subr.mxu0 0.0
    %116 = vmatpush1.msra.mxu0 0.0
    %117 = vmatprep.subr.mxu0 0.0
    %118 = vmatpush1.msra.mxu0 0.0
    %119 = vmatprep.subr.mxu0 0.0
    %120 = vmatpush1.msra.mxu0 0.0
    %121 = vmatprep.subr.mxu0 0.0
    %122 = vmatpush1.msra.mxu0 0.0
    %123 = vmatprep.subr.mxu0 0.0
    %124 = vmatpush1.msra.mxu0 0.0
    %125 = vmatprep.subr.mxu0 0.0
    %126 = vmatpush1.msra.mxu0 0.0
    %127 = vmatprep.subr.mxu0 0.0
    %128 = vmatpush1.msra.mxu0 0.0
    %129 = vmatprep.subr.mxu0 0.0
    %130 = vmatpush1.msra.mxu0 0.0
    %131 = vmatprep.subr.mxu0 0.0
    %132 = vmatpush1.msra.mxu0 0.0
    %133 = vmatprep.subr.mxu0 0.0
    %134 = vmatpush1.msra.mxu0 0.0
    %135 = vmatprep.subr.mxu0 0.0
    %136 = vmatpush1.msra.mxu0 0.0
    %137 = vmatprep.subr.mxu0 0.0
    %138 = vmatpush1.msra.mxu0 0.0
    %139 = vmatprep.subr.mxu0 0.0
    %140 = vmatpush1.msra.mxu0 0.0
    %141 = vmatprep.subr.mxu0 0.0
    %142 = vmatpush1.msra.mxu0 0.0
    %143 = vmatprep.subr.mxu0 0.0
    %144 = vmatpush1.msra.mxu0 0.0
    %145 = vmatprep.subr.mxu0 0.0
    %146 = vmatpush1.msra.mxu0 0.0
    %147 = vmatprep.subr.mxu0 0.0
    %148 = vmatpush1.msra.mxu0 0.0
    %149 = vmatprep.subr.mxu0 0.0
    %150 = vmatpush1.msra.mxu0 0.0
    %151 = vmatprep.subr.mxu0 0.0
    %152 = vmatpush1.msra.mxu0 0.0
    %153 = vmatprep.subr.mxu0 0.0
    %154 = vmatpush1.msra.mxu0 0.0
    %155 = vmatprep.mubr.f32.mxu0 0.0
    %156 = vmatmul.mubr.f32.gmra.mrb[0].mxu0 %v86
    %v157 = vpop.f32.mrb[0].mxu0
    %v158 = vadd.f32 %v62, %v157
    %v159 = vpop.f32.mrb[0].mxu0
    %160 = vmatprep.mubr.f32.mxu0 0.0
    %161 = vmatmul.mubr.f32.gmra.mrb[0].mxu0 %v89
    %v162 = vpop.f32.mrb[0].mxu0
    %v163 = vadd.f32 %v62, %v162
    %v164 = vpop.f32.mrb[0].mxu0
    %165 = vdwg.mxu0
    %v166 = vmax.f32 %v158, 0.0
    %v167 = vmax.f32 %v163, 0.0
    %v168 = vlaneseq
    %v169 = vshrl.u32 %v168, 7
    %v170 = vsub.s32 0, %v169
    %v171 = vrot.slane %v71, %v170
    %vm172 = vcmask 523264
    %v174 = vsel %vm172, %v166, 0
    %v177 = vsel %vm172, %v167, 0
    %179 = vmatprep.subr.mxu0 0.0
    %180 = vmatpush1.msra.mxu0 %v63
    %181 = vmatprep.subr.mxu0 0.0
    %182 = vmatpush1.msra.mxu0 %v64
    %183 = vmatprep.subr.mxu0 0.0
    %184 = vmatpush1.msra.mxu0 %v65
    %185 = vmatprep.subr.mxu0 0.0
    %186 = vmatpush1.msra.mxu0 %v66
    %187 = vmatprep.subr.mxu0 0.0
    %188 = vmatpush1.msra.mxu0 %v67
    %189 = vmatprep.subr.mxu0 0.0
    %190 = vmatpush1.msra.mxu0 %v68
    %191 = vmatprep.subr.mxu0 0.0
    %192 = vmatpush1.msra.mxu0 %v69
    %193 = vmatprep.subr.mxu0 0.0
    %194 = vmatpush1.msra.mxu0 %v70
    %195 = vmatprep.subr.mxu0 0.0
    %196 = vmatpush1.msra.mxu0 0.0
    %197 = vmatprep.subr.mxu0 0.0
    %198 = vmatpush1.msra.mxu0 0.0
    %199 = vmatprep.subr.mxu0 0.0
    %200 = vmatpush1.msra.mxu0 0.0
    %201 = vmatprep.subr.mxu0 0.0
    %202 = vmatpush1.msra.mxu0 0.0
    %203 = vmatprep.subr.mxu0 0.0
    %204 = vmatpush1.msra.mxu0 0.0
    %205 = vmatprep.subr.mxu0 0.0
    %206 = vmatpush1.msra.mxu0 0.0
    %207 = vmatprep.subr.mxu0 0.0
    %208 = vmatpush1.msra.mxu0 0.0
    %209 = vmatprep.subr.mxu0 0.0
    %210 = vmatpush1.msra.mxu0 0.0
    %211 = vmatprep.subr.mxu0 0.0
    %212 = vmatpush1.msra.mxu0 0.0
    %213 = vmatprep.subr.mxu0 0.0
    %214 = vmatpush1.msra.mxu0 0.0
    %215 = vmatprep.subr.mxu0 0.0
    %216 = vmatpush1.msra.mxu0 0.0
    %217 = vmatprep.subr.mxu0 0.0
    %218 = vmatpush1.msra.mxu0 0.0
    %219 = vmatprep.subr.mxu0 0.0
    %220 = vmatpush1.msra.mxu0 0.0
    %221 = vmatprep.subr.mxu0 0.0
    %222 = vmatpush1.msra.mxu0 0.0
    %223 = vmatprep.subr.mxu0 0.0
    %224 = vmatpush1.msra.mxu0 0.0
    %225 = vmatprep.subr.mxu0 0.0
    %226 = vmatpush1.msra.mxu0 0.0
    %227 = vmatprep.subr.mxu0 0.0
    %228 = vmatpush1.msra.mxu0 0.0
    %229 = vmatprep.subr.mxu0 0.0
    %230 = vmatpush1.msra.mxu0 0.0
    %231 = vmatprep.subr.mxu0 0.0
    %232 = vmatpush1.msra.mxu0 0.0
    %233 = vmatprep.subr.mxu0 0.0
    %234 = vmatpush1.msra.mxu0 0.0
    %235 = vmatprep.subr.mxu0 0.0
    %236 = vmatpush1.msra.mxu0 0.0
    %237 = vmatprep.subr.mxu0 0.0
    %238 = vmatpush1.msra.mxu0 0.0
    %239 = vmatprep.subr.mxu0 0.0
    %240 = vmatpush1.msra.mxu0 0.0
    %241 = vmatprep.subr.mxu0 0.0
    %242 = vmatpush1.msra.mxu0 0.0
    %243 = vmatprep.mubr.f32.mxu0 0.0
    %244 = vmatmul.mubr.f32.gmra.mrb[0].mxu0 %v174
    %v245 = vpop.f32.mrb[0].mxu0
    %v246 = vadd.f32 %v171, %v245
    %v247 = vpop.f32.mrb[0].mxu0
    %248 = vmatprep.mubr.f32.mxu0 0.0
    %249 = vmatmul.mubr.f32.gmra.mrb[0].mxu0 %v177
    %v250 = vpop.f32.mrb[0].mxu0
    %v251 = vadd.f32 %v171, %v250
    %v252 = vpop.f32.mrb[0].mxu0
    %253 = vdwg.mxu0
    %v254 = vld [vmem:[#allocation5] sm:$0xff]
    %v255 = vld [vmem:[#allocation5 + $0x8] sm:$0xff]
    %v256 = vmul.f32 %v246, 1.442695
    %v257 = vpow.pop %v256
    %v258 = vmul.f32 %v251, 1.442695
    %v259 = vpow.pop %v258
    %262 = vrot.lane.b32.xlu0 %v257, 96
    %v263 = vpop.permute.xlu0 %262
    %264 = vrot.lane.b32.xlu0 %v259, 96
    %v265 = vpop.permute.xlu0 %264
    %v268 = vmul.f32 %v254, %v263
    %v269 = vmul.f32 %v255, %v265
    %v270 = vadd.f32 %v246, %v268
    %v271 = vadd.f32 %v251, %v269
    %v272 = vlaneseq
    %v273 = vshrl.u32 %v272, 7
    %v274 = vsub.s32 0, %v273
    %v275 = vrot.slane %v76, %v274
    %vm276 = vcmask 261120
    %v278 = vsel %vm276, %v270, 0
    %v281 = vsel %vm276, %v271, 0
    %283 = vmatprep.subr.mxu0 0.0
    %284 = vmatpush1.msra.mxu0 %v72
    %285 = vmatprep.subr.mxu0 0.0
    %286 = vmatpush1.msra.mxu0 %v73
    %287 = vmatprep.subr.mxu0 0.0
    %288 = vmatpush1.msra.mxu0 %v74
    %289 = vmatprep.subr.mxu0 0.0
    %290 = vmatpush1.msra.mxu0 %v75
    %291 = vmatprep.subr.mxu0 0.0
    %292 = vmatpush1.msra.mxu0 0.0
    %293 = vmatprep.subr.mxu0 0.0
    %294 = vmatpush1.msra.mxu0 0.0
    %295 = vmatprep.subr.mxu0 0.0
    %296 = vmatpush1.msra.mxu0 0.0
    %297 = vmatprep.subr.mxu0 0.0
    %298 = vmatpush1.msra.mxu0 0.0
    %299 = vmatprep.subr.mxu0 0.0
    %300 = vmatpush1.msra.mxu0 0.0
    %301 = vmatprep.subr.mxu0 0.0
    %302 = vmatpush1.msra.mxu0 0.0
    %303 = vmatprep.subr.mxu0 0.0
    %304 = vmatpush1.msra.mxu0 0.0
    %305 = vmatprep.subr.mxu0 0.0
    %306 = vmatpush1.msra.mxu0 0.0
    %307 = vmatprep.subr.mxu0 0.0
    %308 = vmatpush1.msra.mxu0 0.0
    %309 = vmatprep.subr.mxu0 0.0
    %310 = vmatpush1.msra.mxu0 0.0
    %311 = vmatprep.subr.mxu0 0.0
    %312 = vmatpush1.msra.mxu0 0.0
    %313 = vmatprep.subr.mxu0 0.0
    %314 = vmatpush1.msra.mxu0 0.0
    %315 = vmatprep.subr.mxu0 0.0
    %316 = vmatpush1.msra.mxu0 0.0
    %317 = vmatprep.subr.mxu0 0.0
    %318 = vmatpush1.msra.mxu0 0.0
    %319 = vmatprep.subr.mxu0 0.0
    %320 = vmatpush1.msra.mxu0 0.0
    %321 = vmatprep.subr.mxu0 0.0
    %322 = vmatpush1.msra.mxu0 0.0
    %323 = vmatprep.subr.mxu0 0.0
    %324 = vmatpush1.msra.mxu0 0.0
    %325 = vmatprep.subr.mxu0 0.0
    %326 = vmatpush1.msra.mxu0 0.0
    %327 = vmatprep.subr.mxu0 0.0
    %328 = vmatpush1.msra.mxu0 0.0
    %329 = vmatprep.subr.mxu0 0.0
    %330 = vmatpush1.msra.mxu0 0.0
    %331 = vmatprep.subr.mxu0 0.0
    %332 = vmatpush1.msra.mxu0 0.0
    %333 = vmatprep.subr.mxu0 0.0
    %334 = vmatpush1.msra.mxu0 0.0
    %335 = vmatprep.subr.mxu0 0.0
    %336 = vmatpush1.msra.mxu0 0.0
    %337 = vmatprep.subr.mxu0 0.0
    %338 = vmatpush1.msra.mxu0 0.0
    %339 = vmatprep.subr.mxu0 0.0
    %340 = vmatpush1.msra.mxu0 0.0
    %341 = vmatprep.subr.mxu0 0.0
    %342 = vmatpush1.msra.mxu0 0.0
    %343 = vmatprep.subr.mxu0 0.0
    %344 = vmatpush1.msra.mxu0 0.0
    %345 = vmatprep.subr.mxu0 0.0
    %346 = vmatpush1.msra.mxu0 0.0
    %347 = vmatprep.mubr.f32.mxu0 0.0
    %348 = vmatmul.mubr.f32.gmra.mrb[0].mxu0 %v278
    %v349 = vpop.f32.mrb[0].mxu0
    %v350 = vadd.f32 %v275, %v349
    %v351 = vpop.f32.mrb[0].mxu0
    %352 = vmatprep.mubr.f32.mxu0 0.0
    %353 = vmatmul.mubr.f32.gmra.mrb[0].mxu0 %v281
    %v354 = vpop.f32.mrb[0].mxu0
    %v355 = vadd.f32 %v275, %v354
    %v356 = vpop.f32.mrb[0].mxu0
    %357 = vdwg.mxu0
    %v358 = vmax.f32 %v350, 0.0
    %v359 = vmax.f32 %v355, 0.0
    %v360 = vlaneseq
    %v361 = vshrl.u32 %v360, 7
    %v362 = vsub.s32 0, %v361
    %v363 = vrot.slane %v81, %v362
    %v365 = vsel %vm276, %v358, 0
    %v368 = vsel %vm276, %v359, 0
    %370 = vmatprep.subr.mxu0 0.0
    %371 = vmatpush1.msra.mxu0 %v77
    %372 = vmatprep.subr.mxu0 0.0
    %373 = vmatpush1.msra.mxu0 %v78
    %374 = vmatprep.subr.mxu0 0.0
    %375 = vmatpush1.msra.mxu0 %v79
    %376 = vmatprep.subr.mxu0 0.0
    %377 = vmatpush1.msra.mxu0 %v80
    %378 = vmatprep.subr.mxu0 0.0
    %379 = vmatpush1.msra.mxu0 0.0
    %380 = vmatprep.subr.mxu0 0.0
    %381 = vmatpush1.msra.mxu0 0.0
    %382 = vmatprep.subr.mxu0 0.0
    %383 = vmatpush1.msra.mxu0 0.0
    %384 = vmatprep.subr.mxu0 0.0
    %385 = vmatpush1.msra.mxu0 0.0
    %386 = vmatprep.subr.mxu0 0.0
    %387 = vmatpush1.msra.mxu0 0.0
    %388 = vmatprep.subr.mxu0 0.0
    %389 = vmatpush1.msra.mxu0 0.0
    %390 = vmatprep.subr.mxu0 0.0
    %391 = vmatpush1.msra.mxu0 0.0
    %392 = vmatprep.subr.mxu0 0.0
    %393 = vmatpush1.msra.mxu0 0.0
    %394 = vmatprep.subr.mxu0 0.0
    %395 = vmatpush1.msra.mxu0 0.0
    %396 = vmatprep.subr.mxu0 0.0
    %397 = vmatpush1.msra.mxu0 0.0
    %398 = vmatprep.subr.mxu0 0.0
    %399 = vmatpush1.msra.mxu0 0.0
    %400 = vmatprep.subr.mxu0 0.0
    %401 = vmatpush1.msra.mxu0 0.0
    %402 = vmatprep.subr.mxu0 0.0
    %403 = vmatpush1.msra.mxu0 0.0
    %404 = vmatprep.subr.mxu0 0.0
    %405 = vmatpush1.msra.mxu0 0.0
    %406 = vmatprep.subr.mxu0 0.0
    %407 = vmatpush1.msra.mxu0 0.0
    %408 = vmatprep.subr.mxu0 0.0
    %409 = vmatpush1.msra.mxu0 0.0
    %410 = vmatprep.subr.mxu0 0.0
    %411 = vmatpush1.msra.mxu0 0.0
    %412 = vmatprep.subr.mxu0 0.0
    %413 = vmatpush1.msra.mxu0 0.0
    %414 = vmatprep.subr.mxu0 0.0
    %415 = vmatpush1.msra.mxu0 0.0
    %416 = vmatprep.subr.mxu0 0.0
    %417 = vmatpush1.msra.mxu0 0.0
    %418 = vmatprep.subr.mxu0 0.0
    %419 = vmatpush1.msra.mxu0 0.0
    %420 = vmatprep.subr.mxu0 0.0
    %421 = vmatpush1.msra.mxu0 0.0
    %422 = vmatprep.subr.mxu0 0.0
    %423 = vmatpush1.msra.mxu0 0.0
    %424 = vmatprep.subr.mxu0 0.0
    %425 = vmatpush1.msra.mxu0 0.0
    %426 = vmatprep.subr.mxu0 0.0
    %427 = vmatpush1.msra.mxu0 0.0
    %428 = vmatprep.subr.mxu0 0.0
    %429 = vmatpush1.msra.mxu0 0.0
    %430 = vmatprep.subr.mxu0 0.0
    %431 = vmatpush1.msra.mxu0 0.0
    %432 = vmatprep.subr.mxu0 0.0
    %433 = vmatpush1.msra.mxu0 0.0
    %434 = vmatprep.mubr.f32.mxu0 0.0
    %435 = vmatmul.mubr.f32.gmra.mrb[0].mxu0 %v365
    %v436 = vpop.f32.mrb[0].mxu0
    %v437 = vadd.f32 %v363, %v436
    %v438 = vpop.f32.mrb[0].mxu0
    %439 = vmatprep.mubr.f32.mxu0 0.0
    %440 = vmatmul.mubr.f32.gmra.mrb[0].mxu0 %v368
    %v441 = vpop.f32.mrb[0].mxu0
    %v442 = vadd.f32 %v363, %v441
    %v443 = vpop.f32.mrb[0].mxu0
    %444 = vdwg.mxu0
    %445 = vst.msk [vmem:[#allocation8] sm:$0xff] %vm84, %v437
    %446 = vst.msk [vmem:[#allocation8 + $0x8] sm:$0xff] %vm84, %v442
    %447 = vst.msk [vmem:[#allocation9] sm:$0xff] %vm276, %v246
    %448 = vst.msk [vmem:[#allocation9 + $0x8] sm:$0xff] %vm276, %v251
    %451 = vrot.lane.b32.xlu0 %v246, 96
    %v452 = vpop.permute.xlu0 %451
    %453 = vrot.lane.b32.xlu0 %v251, 96
    %v454 = vpop.permute.xlu0 %453
    %457 = vst.msk [vmem:[#allocation11] sm:$0xff] %vm276, %v452
    %458 = vst.msk [vmem:[#allocation11 + $0x8] sm:$0xff] %vm276, %v454
    // Predicated region
    $region26: #{tpu_custom_call.1} parent=1 // pred_check
      _
    $region27: #{tpu_custom_call.1} parent=1 // pred_check_branch
      %460 = sbr.rel (0) target = $region29
    $region28: #{tpu_custom_call.1} parent=1 // pred_region
      %s462 = ssub.s32 256, 256
      %463 = vsyncadd [#allocation4], %s462
      %s464 = sshll.u32 [#allocation8], 4
      %s465 = int_to_ptr.vmem [resolvable:$true] %s464
      %470 = dma.vmem_to_hbm [thread:$0]  %s465, 256, %s3, [#allocation4], 128, 128, 8
    $region29: #{tpu_custom_call.1} parent=1 // pred_fallthru
      _
    // Predicated region
    $region30: #{tpu_custom_call.1} parent=1 // pred_check
      _
    $region31: #{tpu_custom_call.1} parent=1 // pred_check_branch
      %472 = sbr.rel (0) target = $region33
    $region32: #{tpu_custom_call.1} parent=1 // pred_region
      %s474 = ssub.s32 256, 256
      %475 = vsyncadd [#allocation10], %s474
      %s476 = sshll.u32 [#allocation9], 4
      %s477 = int_to_ptr.vmem [resolvable:$true] %s476
      %482 = dma.vmem_to_hbm [thread:$0]  %s477, 256, %s4, [#allocation10], 128, 128, 8
    $region33: #{tpu_custom_call.1} parent=1 // pred_fallthru
      _
    // Predicated region
    $region34: #{tpu_custom_call.1} parent=1 // pred_check
      _
    $region35: #{tpu_custom_call.1} parent=1 // pred_check_branch
      %484 = sbr.rel (0) target = $region37
    $region36: #{tpu_custom_call.1} parent=1 // pred_region
      %s486 = ssub.s32 256, 256
      %487 = vsyncadd [#allocation10], %s486
      %s488 = sshll.u32 [#allocation11], 4
      %s489 = int_to_ptr.vmem [resolvable:$true] %s488
      %494 = dma.vmem_to_hbm [thread:$0]  %s489, 256, %s5, [#allocation10], 128, 128, 8
    $region37: #{tpu_custom_call.1} parent=1 // pred_fallthru
      _
    // Predicated region
    $region38: #{tpu_custom_call.1} parent=1 // pred_check
      _
    $region39: #{tpu_custom_call.1} parent=1 // pred_check_branch
      %496 = sbr.rel (0) target = $region41
    $region40: #{tpu_custom_call.1} parent=1 // pred_region
      %497 = dma.done [#allocation4], 256
    $region41: #{tpu_custom_call.1} parent=1 // pred_fallthru
      _
    // Predicated region
    $region42: #{tpu_custom_call.1} parent=1 // pred_check
      _
    $region43: #{tpu_custom_call.1} parent=1 // pred_check_branch
      %499 = sbr.rel (0) target = $region45
    $region44: #{tpu_custom_call.1} parent=1 // pred_region
      %500 = dma.done [#allocation10], 256
    $region45: #{tpu_custom_call.1} parent=1 // pred_fallthru
      _
    // Predicated region
    $region46: #{tpu_custom_call.1} parent=1 // pred_check
      _
    $region47: #{tpu_custom_call.1} parent=1 // pred_check_branch
      %502 = sbr.rel (0) target = $region49
    $region48: #{tpu_custom_call.1} parent=1 // pred_region
      %503 = dma.done [#allocation10], 256
    $region49: #{tpu_custom_call.1} parent=1 // pred_fallthru
      _
    %504 = vsyncpa [#allocation3], 1
    %505 = vsyncpa [#allocation6], 1
    %506 = vsyncpa [#allocation4], 1
    %507 = vsyncpa [#allocation10], 1

</llo_original>
